<compile_context>
chip_gen: v7x
topology: tpu7x:2x2x1
jax: 0.10.0
libtpu: 0.0.40
codegen_flags: <defaults>
</compile_context>

<pallas_src>
import math
import numpy as np
import jax
import jax.numpy as jnp
from jax.experimental import pallas as pl
from jax.experimental.pallas import tpu as pltpu

SIGAMA = 8.0
_LANE = 128
_MAX_TILE = 8192


# ----------------------------------------------------------------------------
# Pallas kernel: fused sigmoid / smooth-L1 / focal-heatmap loss + reduction
# ----------------------------------------------------------------------------
def _make_kernel(tile, hw_valid, hw_pad):
    need_mask = (hw_pad != hw_valid)
    nchunk = tile // _LANE

    def kernel(pcoord_ref, phm_ref, tgt_ref, scale_ref, gw_ref, out_ref):
        b = pl.program_id(1)                    # batch = reduction axis (last)

        @pl.when(b == 0)
        def _init():
            out_ref[...] = jnp.zeros_like(out_ref)

        p4 = pcoord_ref[...].astype(jnp.float32)       # (4, T)
        logits = phm_ref[...].astype(jnp.float32)      # (NC, T)
        tgt4 = tgt_ref[...].astype(jnp.float32)        # (4, T)
        coord_scale = scale_ref[...].astype(jnp.float32)  # (1, T)
        gw = gw_ref[...].astype(jnp.float32)           # (NC, T)

        # ---- fused coordinate branch: one (4, T) slab ----------------------
        # rows 0,1 (x, y) take a sigmoid; rows 2,3 (w, h) stay raw logits.
        rows = jax.lax.broadcasted_iota(jnp.int32, (4, 1), 0)
        pred4 = jnp.where(rows < 2, jax.nn.sigmoid(p4), p4)
        d = pred4 - tgt4
        ad = jnp.abs(d)
        sl1 = jnp.where(ad < 1.0, 0.5 * d * d, ad - 0.5)
        # coord_scale is exactly 0 off-center (target builder invariant), so the
        # original `* mask` inside smooth_l1 is redundant.
        coord_loss = coord_scale * sl1                  # (4, T)

        # ---- focal heatmap loss in logit space (NaN-safe, 2 EUP exp/log) ---
        # e = exp(-|z|), denom = 1 + e
        # sigmoid(z) = where(z>=0, 1/denom, e/denom)    (approx reciprocal, EUP slot)
        # log(sigmoid(z))     = min(z, 0) - log(denom)
        # log(1 - sigmoid(z)) = log(sigmoid(z)) - z
        e = jnp.exp(-jnp.abs(logits))
        denom = 1.0 + e
        inv = pl.reciprocal(denom, approx=True)
        pc = jnp.where(logits >= 0.0, inv, e * inv)
        log_pc = jnp.minimum(logits, 0.0) - jnp.log(denom)
        log_1mpc = log_pc - logits

        # gweight is f32 with Gaussian peaks exactly exp(0)==1.0, so >= 1.0 picks
        # exactly the positive centers (do NOT feed bf16 gweight here).
        pos = (gw >= 1.0).astype(jnp.float32)
        neg = 1.0 - pos
        one_m_gw = 1.0 - gw
        neg_w = (one_m_gw * one_m_gw) * (one_m_gw * one_m_gw)   # (1-gw)^4
        one_m_pc = 1.0 - pc

        pos_loss = log_pc * (one_m_pc * one_m_pc) * pos
        neg_loss = log_1mpc * (pc * pc) * neg_w * neg
        hm = -(pos_loss + neg_loss)                              # (NC, T)

        if need_mask:
            base = pl.program_id(0) * tile
            lane = base + jax.lax.broadcasted_iota(jnp.int32, (1, tile), 1)
            valid = (lane < hw_valid).astype(jnp.float32)        # (1, T)
            coord_loss = coord_loss * valid
            hm = hm * valid

        # ---- lane-dense partial reduction (T -> 128 lanes, VPU adds) -------
        def fold(x):                                   # (r, T) -> (r, 128)
            acc = x[:, 0:_LANE]
            for k in range(1, nchunk):
                acc = acc + x[:, k * _LANE:(k + 1) * _LANE]
            return acc

        coord128 = fold(coord_loss)                              # (4, 128)
        hm128 = fold(hm)                                         # (NC, 128)
        hm_row = jnp.sum(hm128, axis=0, keepdims=True)           # (1, 128)

        partial = jnp.concatenate(
            [coord128, hm_row, jnp.zeros((3, _LANE), jnp.float32)], axis=0)
        out_ref[...] += partial                                  # full (8,128) RMW

    return kernel


def _choose_tiling(hw):
    """Pick (tile, n_tiles, hw_pad): lane-dense tiles, <=8192 lanes, >=2 tiles
    whenever possible so v7x's second TensorCore gets work."""
    hw128 = -(-hw // _LANE) * _LANE
    n_tiles = max(1, -(-hw128 // _MAX_TILE))
    if n_tiles == 1 and hw128 >= 2 * _LANE:
        n_tiles = 2
    per = -(-hw128 // n_tiles)
    tile = -(-per // _LANE) * _LANE
    hw_pad = n_tiles * tile
    return tile, n_tiles, hw_pad


def _run_loss_kernel(pred_coord, pred_hm, tgt_coord, coord_scale, gweight,
                     tile, n_tiles, hw_valid, hw_pad):
    bs, nc, _ = pred_hm.shape

    rows_total = 4 + nc + 4 + 1 + nc
    window_bytes = rows_total * tile * 4
    vmem_limit = int(min(64 * 2 ** 20, max(4 * window_bytes + (1 << 20), 8 * 2 ** 20)))

    cost = pl.CostEstimate(
        flops=int(bs * hw_pad * (18 * nc + 40)),
        transcendentals=int(bs * hw_pad * (2 * nc + 8)),
        bytes_accessed=int(4 * bs * hw_pad * (2 * nc + 9) + 4 * n_tiles * 8 * 128),
    )

    kernel = _make_kernel(tile, hw_valid, hw_pad)

    return pl.pallas_call(
        kernel,
        out_shape=jax.ShapeDtypeStruct((n_tiles, 8, 128), jnp.float32),
        grid_spec=pltpu.PrefetchScalarGridSpec(
            num_scalar_prefetch=0,
            grid=(n_tiles, bs),
            in_specs=[
                pl.BlockSpec((None, 4, tile), lambda t, b: (b, 0, t)),
                pl.BlockSpec((None, nc, tile), lambda t, b: (b, 0, t)),
                pl.BlockSpec((None, 4, tile), lambda t, b: (b, 0, t)),
                pl.BlockSpec((None, 1, tile), lambda t, b: (b, 0, t)),
                pl.BlockSpec((None, nc, tile), lambda t, b: (b, 0, t)),
            ],
            out_specs=pl.BlockSpec((None, 8, 128), lambda t, b: (t, 0, 0)),
        ),
        compiler_params=pltpu.CompilerParams(
            dimension_semantics=("parallel", "arbitrary"),
            vmem_limit_bytes=vmem_limit),
        cost_estimate=cost,
    )(pred_coord, pred_hm, tgt_coord, coord_scale, gweight)


# ----------------------------------------------------------------------------
# Host-side target preprocessing (numpy), mirroring get_target()
# ----------------------------------------------------------------------------
def _gaussian_radius(h, w, min_overlap=0.7):
    a1, b1 = 1.0, h + w
    c1 = w * h * (1 - min_overlap) / (1 + min_overlap)
    r1 = (b1 + math.sqrt(max(b1 * b1 - 4 * a1 * c1, 0.0))) / 2
    a2, b2 = 4.0, 2 * (h + w)
    c2 = (1 - min_overlap) * w * h
    r2 = (b2 + math.sqrt(max(b2 * b2 - 4 * a2 * c2, 0.0))) / 2
    a3, b3 = 4 * min_overlap, -2 * min_overlap * (h + w)
    c3 = (min_overlap - 1) * w * h
    r3 = (b3 + math.sqrt(max(b3 * b3 - 4 * a3 * c3, 0.0))) / 2
    return max(0.0, min(r1, r2, r3))


def _box_gaussian_map(gi, gj, gw, gh, in_w, in_h, min_overlap=0.7):
    r = max(0, int(_gaussian_radius(math.ceil(gh), math.ceil(gw), min_overlap)))
    diameter = 2 * r + 1
    sigma = diameter / 6.0
    yy, xx = np.ogrid[-r:r + 1, -r:r + 1]
    g = np.exp(-(xx * xx + yy * yy) / (2 * sigma * sigma))
    g[g < np.finfo(g.dtype).eps * g.max()] = 0
    left, right = max(gi - r, 0), min(gi + r, in_w - 1)
    top, bottom = max(gj - r, 0), min(gj + r, in_h - 1)
    gmap = g[r - (gj - top): r + (bottom - gj) + 1,
             r - (gi - left): r + (right - gi) + 1]
    return gmap.astype(np.float32), (top, left, bottom, right)


def get_target_np(target, in_w, in_h, num_classes, sigama=SIGAMA):
    n_obj = 0
    bs = target.shape[0]
    mask = np.zeros((bs, in_h, in_w), np.float32)
    scales = np.zeros((bs, in_h, in_w), np.float32)
    tx = np.zeros((bs, in_h, in_w), np.float32)
    ty = np.zeros((bs, in_h, in_w), np.float32)
    tw = np.zeros((bs, in_h, in_w), np.float32)
    th = np.zeros((bs, in_h, in_w), np.float32)
    tcls = np.zeros((bs, in_h, in_w, num_classes), np.float32)
    gweight = np.zeros((bs, in_h, in_w, num_classes), np.float32)
    for b in range(bs):
        for t in range(target.shape[1]):
            if target[b, t].sum() == 0:
                continue
            n_obj += 1
            gx = target[b, t, 1] * in_w
            gy = target[b, t, 2] * in_h
            gw = target[b, t, 3] * in_w
            gh = target[b, t, 4] * in_h
            gi, gj = int(gx), int(gy)
            c = int(target[b, t, 0])
            if tcls[b, gj, gi, c] == 1:
                n_obj -= 1
                continue
            mask[b, gj, gi] = 1
            scales[b, gj, gi] = 2 - target[b, t, 3] * target[b, t, 4]
            tx[b, gj, gi] = gx - gi
            ty[b, gj, gi] = gy - gj
            tw[b, gj, gi] = math.log(gw / sigama + 1e-16)
            th[b, gj, gi] = math.log(gh / sigama + 1e-16)
            tcls[b, gj, gi, c] = 1
            gmap, (top, left, bottom, right) = _box_gaussian_map(
                gi, gj, gw, gh, in_w, in_h)
            gweight[b, top:bottom + 1, left:right + 1, c] = np.maximum(
                gweight[b, top:bottom + 1, left:right + 1, c], gmap)
    return n_obj, mask, tx, ty, tw, th, tcls, scales, gweight


def _pad_last(a, hw_pad):
    hw = a.shape[-1]
    if hw == hw_pad:
        return a
    pad = [(0, 0)] * (a.ndim - 1) + [(0, hw_pad - hw)]
    return np.pad(a, pad)


# ----------------------------------------------------------------------------
# Forward wrapper (training branch of centernet_Loss.forward)
# ----------------------------------------------------------------------------
def centernet_loss_forward(inp, targets, num_classes):
    bs, A, H, W = inp.shape
    assert A == 4 + num_classes
    HW = H * W
    tile, n_tiles, hw_pad = _choose_tiling(HW)

    n_obj, mask, tx, ty, tw, th, tcls, scales, gweight = get_target_np(
        np.asarray(targets), W, H, num_classes)

    # sublane-0-aligned target slabs, dead rows dropped (5 rows total)
    tgt_coord = np.stack([tx, ty, tw, th], axis=1).reshape(bs, 4, HW).astype(np.float32)
    coord_scale = scales.reshape(bs, 1, HW).astype(np.float32)
    gweight_nchw = np.transpose(gweight, (0, 3, 1, 2)).reshape(
        bs, num_classes, HW).astype(np.float32)   # keep f32 (peak == 1.0 test)

    tgt_coord = _pad_last(tgt_coord, hw_pad)
    coord_scale = _pad_last(coord_scale, hw_pad)
    gweight_nchw = _pad_last(gweight_nchw, hw_pad)

    # keep the prediction in its native dtype (bf16 passes through untouched;
    # the kernel upcasts to f32 internally)
    pred = jnp.asarray(inp).reshape(bs, A, HW)
    if hw_pad != HW:
        pred = jnp.pad(pred, ((0, 0), (0, 0), (0, hw_pad - HW)))
    pred_coord = pred[:, :4, :]
    pred_hm = pred[:, 4:, :]

    partial = _run_loss_kernel(
        pred_coord, pred_hm,
        jnp.asarray(tgt_coord), jnp.asarray(coord_scale), jnp.asarray(gweight_nchw),
        tile, n_tiles, HW, hw_pad)                        # (n_tiles, 8, 128)
    sums = jnp.sum(partial, axis=(0, 2))                  # (8,)

    n_obj_f = jnp.float32(max(n_obj, 1))
    loss_x = sums[0] / n_obj_f
    loss_y = sums[1] / n_obj_f
    loss_w = sums[2] / n_obj_f
    loss_h = sums[3] / n_obj_f
    has_pos = float((tcls == 1).sum()) > 0
    loss_conf = sums[4] / n_obj_f if has_pos else jnp.float32(0.0)

    loss = loss_x + loss_y + loss_w + loss_h + loss_conf
    return loss, loss_x, loss_y, loss_w, loss_h, loss_conf


if __name__ == "__main__":
    bs, num_classes, H, W = 2, 4, 16, 16
    A = 4 + num_classes

    key = jax.random.PRNGKey(0)
    x = jax.random.normal(key, (bs, A, H, W), dtype=jnp.float32)

    # targets: (bs, max_objs, 5) = [class, cx, cy, w, h] normalized; zero rows = no object
    targets = np.array(
        [[[0, 0.30, 0.40, 0.20, 0.30],
          [2, 0.70, 0.60, 0.40, 0.25],
          [0, 0.00, 0.00, 0.00, 0.00]],
         [[1, 0.50, 0.50, 0.50, 0.50],
          [3, 0.20, 0.80, 0.15, 0.20],
          [0, 0.00, 0.00, 0.00, 0.00]]], dtype=np.float32)

    loss, lx, ly, lw, lh, lc = centernet_loss_forward(x, targets, num_classes)
    loss = jax.block_until_ready(loss)
    jax.block_until_ready((lx, ly, lw, lh, lc))
    assert bool(jnp.isfinite(loss)), "loss is not finite"
    print("KERNEL_OK")
</pallas_src>

<mosaic_0001>
module attributes {stable_mosaic.version = 11 : i64} {
  func.func @kernel(%arg0: i32, %arg1: i32, %arg2: memref<1x4x128xf32, #tpu.memory_space<vmem>>, %arg3: memref<1x4x128xf32, #tpu.memory_space<vmem>>, %arg4: memref<1x4x128xf32, #tpu.memory_space<vmem>>, %arg5: memref<1x1x128xf32, #tpu.memory_space<vmem>>, %arg6: memref<1x4x128xf32, #tpu.memory_space<vmem>>, %arg7: memref<1x8x128xf32, #tpu.memory_space<vmem>>) attributes {dimension_semantics = [#tpu.dimension_semantics<parallel>, #tpu.dimension_semantics<arbitrary>], iteration_bounds = array<i64: 2, 2>, scalar_prefetch = 0 : i64, scratch_operands = 0 : i64, tpu.core_type = #tpu.core_type<tc>, window_params = [{transform_indices = @transform_0, window_bounds = array<i64: 1, 4, 128>}, {transform_indices = @transform_1, window_bounds = array<i64: 1, 4, 128>}, {transform_indices = @transform_2, window_bounds = array<i64: 1, 4, 128>}, {transform_indices = @transform_3, window_bounds = array<i64: 1, 1, 128>}, {transform_indices = @transform_4, window_bounds = array<i64: 1, 4, 128>}, {transform_indices = @transform_5, window_bounds = array<i64: 1, 8, 128>}]} {
    %c0_i32 = arith.constant 0 : i32
    %0 = arith.cmpi eq, %arg1, %c0_i32 : i32
    %1 = arith.extui %0 : i1 to i32
    %c0_i32_0 = arith.constant 0 : i32
    %2 = arith.cmpi ne, %1, %c0_i32_0 : i32
    scf.if %2 {
      %cst_35 = arith.constant 0.000000e+00 : f32
      %85 = vector.broadcast %cst_35 : f32 to vector<8x128xf32>
      %c0_36 = arith.constant 0 : index
      %c0_37 = arith.constant 0 : index
      %c0_38 = arith.constant 0 : index
      %86 = vector.load %arg7[%c0_36, %c0_37, %c0_38] : memref<1x8x128xf32, #tpu.memory_space<vmem>>, vector<1x8x128xf32>
      %87 = vector.shape_cast %86 : vector<1x8x128xf32> to vector<8x128xf32>
      %88 = vector.shape_cast %85 : vector<8x128xf32> to vector<1x8x128xf32>
      tpu.vector_store %arg7[%c0_36, %c0_37, %c0_38], %88 {strides = array<i32>} : memref<1x8x128xf32, #tpu.memory_space<vmem>>, vector<1x8x128xf32>,
    } else {
    }
    %c0 = arith.constant 0 : index
    %c0_1 = arith.constant 0 : index
    %c0_2 = arith.constant 0 : index
    %3 = vector.load %arg2[%c0, %c0_1, %c0_2] : memref<1x4x128xf32, #tpu.memory_space<vmem>>, vector<1x4x128xf32>
    %4 = vector.shape_cast %3 : vector<1x4x128xf32> to vector<4x128xf32>
    %c0_3 = arith.constant 0 : index
    %c0_4 = arith.constant 0 : index
    %c0_5 = arith.constant 0 : index
    %5 = vector.load %arg3[%c0_3, %c0_4, %c0_5] : memref<1x4x128xf32, #tpu.memory_space<vmem>>, vector<1x4x128xf32>
    %6 = vector.shape_cast %5 : vector<1x4x128xf32> to vector<4x128xf32>
    %c0_6 = arith.constant 0 : index
    %c0_7 = arith.constant 0 : index
    %c0_8 = arith.constant 0 : index
    %7 = vector.load %arg4[%c0_6, %c0_7, %c0_8] : memref<1x4x128xf32, #tpu.memory_space<vmem>>, vector<1x4x128xf32>
    %8 = vector.shape_cast %7 : vector<1x4x128xf32> to vector<4x128xf32>
    %c0_9 = arith.constant 0 : index
    %c0_10 = arith.constant 0 : index
    %c0_11 = arith.constant 0 : index
    %9 = vector.load %arg5[%c0_9, %c0_10, %c0_11] : memref<1x1x128xf32, #tpu.memory_space<vmem>>, vector<1x1x128xf32>
    %10 = vector.shape_cast %9 : vector<1x1x128xf32> to vector<1x128xf32>
    %c0_12 = arith.constant 0 : index
    %c0_13 = arith.constant 0 : index
    %c0_14 = arith.constant 0 : index
    %11 = vector.load %arg6[%c0_12, %c0_13, %c0_14] : memref<1x4x128xf32, #tpu.memory_space<vmem>>, vector<1x4x128xf32>
    %12 = vector.shape_cast %11 : vector<1x4x128xf32> to vector<4x128xf32>
    %13 = tpu.iota {dimensions = array<i32: 0>} : vector<4x1xi32>
    %c2_i32 = arith.constant 2 : i32
    %14 = vector.broadcast %c2_i32 : i32 to vector<4x1xi32>
    %15 = arith.cmpi slt, %13, %14 : vector<4x1xi32>
    %16 = arith.negf %4 : vector<4x128xf32>
    %17 = math.exp %16 : vector<4x128xf32>
    %cst = arith.constant 1.000000e+00 : f32
    %18 = vector.broadcast %cst : f32 to vector<4x128xf32>
    %19 = arith.addf %18, %17 : vector<4x128xf32>
    %20 = arith.divf %18, %19 : vector<4x128xf32>
    %21 = vector.shape_cast %15 : vector<4x1xi1> to vector<4x1xi1>
    %22 = vector.broadcast %21 : vector<4x1xi1> to vector<4x128xi1>
    %23 = arith.select %22, %20, %4 : vector<4x128xi1>, vector<4x128xf32>
    %24 = arith.subf %23, %8 : vector<4x128xf32>
    %25 = math.absf %24 : vector<4x128xf32>
    %cst_15 = arith.constant 1.000000e+00 : f32
    %26 = vector.broadcast %cst_15 : f32 to vector<4x128xf32>
    %27 = arith.cmpf olt, %25, %26 : vector<4x128xf32>
    %cst_16 = arith.constant 5.000000e-01 : f32
    %28 = vector.broadcast %cst_16 : f32 to vector<4x128xf32>
    %29 = arith.mulf %28, %24 : vector<4x128xf32>
    %30 = arith.mulf %29, %24 : vector<4x128xf32>
    %cst_17 = arith.constant 5.000000e-01 : f32
    %31 = vector.broadcast %cst_17 : f32 to vector<4x128xf32>
    %32 = arith.subf %25, %31 : vector<4x128xf32>
    %33 = arith.select %27, %30, %32 : vector<4x128xi1>, vector<4x128xf32>
    %34 = vector.broadcast %10 : vector<1x128xf32> to vector<4x128xf32>
    %35 = arith.mulf %34, %33 : vector<4x128xf32>
    %36 = math.absf %6 : vector<4x128xf32>
    %cst_18 = arith.constant 0.000000e+00 : f32
    %37 = vector.broadcast %cst_18 : f32 to vector<4x128xf32>
    %38 = arith.subf %37, %36 : vector<4x128xf32>
    %39 = math.exp %38 : vector<4x128xf32>
    %cst_19 = arith.constant 1.000000e+00 : f32
    %40 = vector.broadcast %cst_19 : f32 to vector<4x128xf32>
    %41 = arith.addf %40, %39 : vector<4x128xf32>
    %42 = tpu.reciprocal %41 {approx = true} : vector<4x128xf32> -> vector<4x128xf32>
    %cst_20 = arith.constant 0.000000e+00 : f32
    %43 = vector.broadcast %cst_20 : f32 to vector<4x128xf32>
    %44 = arith.cmpf oge, %6, %43 : vector<4x128xf32>
    %45 = arith.mulf %39, %42 : vector<4x128xf32>
    %46 = arith.select %44, %42, %45 : vector<4x128xi1>, vector<4x128xf32>
    %cst_21 = arith.constant 0.000000e+00 : f32
    %47 = vector.broadcast %cst_21 : f32 to vector<4x128xf32>
    %48 = arith.minimumf %6, %47 : vector<4x128xf32>
    %49 = math.log %41 : vector<4x128xf32>
    %50 = arith.subf %48, %49 : vector<4x128xf32>
    %51 = arith.subf %50, %6 : vector<4x128xf32>
    %cst_22 = arith.constant 1.000000e+00 : f32
    %52 = vector.broadcast %cst_22 : f32 to vector<4x128xf32>
    %53 = arith.cmpf oge, %12, %52 : vector<4x128xf32>
    %54 = arith.extui %53 : vector<4x128xi1> to vector<4x128xi32>
    %55 = arith.sitofp %54 : vector<4x128xi32> to vector<4x128xf32>
    %cst_23 = arith.constant 1.000000e+00 : f32
    %56 = vector.broadcast %cst_23 : f32 to vector<4x128xf32>
    %57 = arith.subf %56, %55 : vector<4x128xf32>
    %cst_24 = arith.constant 1.000000e+00 : f32
    %58 = vector.broadcast %cst_24 : f32 to vector<4x128xf32>
    %59 = arith.subf %58, %12 : vector<4x128xf32>
    %60 = arith.mulf %59, %59 : vector<4x128xf32>
    %61 = arith.mulf %59, %59 : vector<4x128xf32>
    %62 = arith.mulf %60, %61 : vector<4x128xf32>
    %cst_25 = arith.constant 1.000000e+00 : f32
    %63 = vector.broadcast %cst_25 : f32 to vector<4x128xf32>
    %64 = arith.subf %63, %46 : vector<4x128xf32>
    %65 = arith.mulf %64, %64 : vector<4x128xf32>
    %66 = arith.mulf %50, %65 : vector<4x128xf32>
    %67 = arith.mulf %66, %55 : vector<4x128xf32>
    %68 = arith.mulf %46, %46 : vector<4x128xf32>
    %69 = arith.mulf %51, %68 : vector<4x128xf32>
    %70 = arith.mulf %69, %62 : vector<4x128xf32>
    %71 = arith.mulf %70, %57 : vector<4x128xf32>
    %72 = arith.addf %67, %71 : vector<4x128xf32>
    %cst_26 = arith.constant 0.000000e+00 : f32
    %73 = vector.broadcast %cst_26 : f32 to vector<4x128xf32>
    %74 = arith.subf %73, %72 : vector<4x128xf32>
    %cst_27 = arith.constant dense<0.000000e+00> : vector<128xf32>
    %75 = vector.multi_reduction <add>, %74, %cst_27 [0] : vector<4x128xf32> to vector<128xf32>
    %76 = vector.shape_cast %75 : vector<128xf32> to vector<1x128xf32>
    %cst_28 = arith.constant 0.000000e+00 : f32
    %77 = vector.broadcast %cst_28 : f32 to vector<3x128xf32>
    %78 = tpu.concatenate %35, %76, %77 in 0 : vector<4x128xf32>, vector<1x128xf32>, vector<3x128xf32> -> vector<8x128xf32>
    %c0_29 = arith.constant 0 : index
    %c0_30 = arith.constant 0 : index
    %c0_31 = arith.constant 0 : index
    %79 = vector.load %arg7[%c0_29, %c0_30, %c0_31] : memref<1x8x128xf32, #tpu.memory_space<vmem>>, vector<1x8x128xf32>
    %80 = vector.shape_cast %79 : vector<1x8x128xf32> to vector<8x128xf32>
    %81 = arith.addf %80, %78 : vector<8x128xf32>
    %c0_32 = arith.constant 0 : index
    %c0_33 = arith.constant 0 : index
    %c0_34 = arith.constant 0 : index
    %82 = vector.load %arg7[%c0_32, %c0_33, %c0_34] : memref<1x8x128xf32, #tpu.memory_space<vmem>>, vector<1x8x128xf32>
    %83 = vector.shape_cast %82 : vector<1x8x128xf32> to vector<8x128xf32>
    %84 = vector.shape_cast %81 : vector<8x128xf32> to vector<1x8x128xf32>
    tpu.vector_store %arg7[%c0_32, %c0_33, %c0_34], %84 {strides = array<i32>} : memref<1x8x128xf32, #tpu.memory_space<vmem>>, vector<1x8x128xf32>,
    return
  }
  func.func @transform_0(%arg0: i32, %arg1: i32) -> (i32, i32, i32) {
    %c0_i32 = arith.constant 0 : i32
    %c0_i32_0 = arith.constant 0 : i32
    return %arg1, %c0_i32, %arg0 : i32, i32, i32
  }
  func.func @transform_1(%arg0: i32, %arg1: i32) -> (i32, i32, i32) {
    %c0_i32 = arith.constant 0 : i32
    %c0_i32_0 = arith.constant 0 : i32
    return %arg1, %c0_i32, %arg0 : i32, i32, i32
  }
  func.func @transform_2(%arg0: i32, %arg1: i32) -> (i32, i32, i32) {
    %c0_i32 = arith.constant 0 : i32
    %c0_i32_0 = arith.constant 0 : i32
    return %arg1, %c0_i32, %arg0 : i32, i32, i32
  }
  func.func @transform_3(%arg0: i32, %arg1: i32) -> (i32, i32, i32) {
    %c0_i32 = arith.constant 0 : i32
    %c0_i32_0 = arith.constant 0 : i32
    return %arg1, %c0_i32, %arg0 : i32, i32, i32
  }
  func.func @transform_4(%arg0: i32, %arg1: i32) -> (i32, i32, i32) {
    %c0_i32 = arith.constant 0 : i32
    %c0_i32_0 = arith.constant 0 : i32
    return %arg1, %c0_i32, %arg0 : i32, i32, i32
  }
  func.func @transform_5(%arg0: i32, %arg1: i32) -> (i32, i32, i32) {
    %c0_i32 = arith.constant 0 : i32
    %c0_i32_0 = arith.constant 0 : i32
    %c0_i32_1 = arith.constant 0 : i32
    return %arg0, %c0_i32, %c0_i32_0 : i32, i32, i32
  }
}

</mosaic_0001>

<llo_original>
// kernel: tpu_custom_call.1
$region0: #{tpu_custom_call.1}
  #allocation0 [shape = 'u32[]', space=smem, size = 0x4, offset = 0x4, fixed_abs, tag = 'smem constant byte address 0x4 - core index']
  #allocation1 [shape = 'u32[144,128]{1,0:T(1,128)}', space=vmem, size = 0x12000, scoped, tag = 'internal scratch']
  %s0 = inlined_call_operand.hbm [shape: f32[2,4,256], index: 0, kind: input, shape index: {}]
  %s1 = inlined_call_operand.hbm [shape: f32[2,4,256], index: 1, kind: input, shape index: {}]
  %s2 = inlined_call_operand.hbm [shape: f32[2,4,256], index: 2, kind: input, shape index: {}]
  %s3 = inlined_call_operand.vmem [shape: f32[2,1,256], index: 3, kind: input, shape index: {}]
  %s4 = inlined_call_operand.hbm [shape: f32[2,4,256], index: 4, kind: input, shape index: {}]
  %s5 = inlined_call_operand.hbm [shape: f32[2,8,128], index: 5, kind: output, shape index: {}]
  %s6 = sld [smem:[#allocation0]]
  $region73: #{tpu_custom_call.1} parent=0
    _
  %s8 = ssub.s32 1, %s6
  %s9 = scalar_select 0, %s8, %s6
  $region1: #{tpu_custom_call.1} parent=0
    #allocation2 [shape = 'u8[4096]{0}', space=vmem, size = 0x1000, scoped, tag = 'input window, operand 0']
    #allocation3 [shape = 's32[2]{0}', space=sflag, size = 0x8, scoped, tag = 'scoped memory for tpu_custom_call.1']
    #allocation4 [shape = 's32[2]{0}', space=sflag, size = 0x8, scoped, tag = 'scoped memory for tpu_custom_call.1']
    #allocation5 [shape = 'u8[4096]{0}', space=vmem, size = 0x1000, scoped, tag = 'input window, operand 1']
    #allocation6 [shape = 's32[2]{0}', space=sflag, size = 0x8, scoped, tag = 'scoped memory for tpu_custom_call.1']
    #allocation7 [shape = 'u8[4096]{0}', space=vmem, size = 0x1000, scoped, tag = 'input window, operand 2']
    #allocation8 [shape = 'u8[4096]{0}', space=vmem, size = 0x1000, scoped, tag = 'input window, operand 4']
    #allocation9 [shape = 's32[2]{0}', space=sflag, size = 0x8, scoped, tag = 'scoped memory for tpu_custom_call.1']
    #allocation10 [shape = 'u8[8192]{0}', space=vmem, size = 0x2000, scoped, tag = 'output window, operand 0']
    %10 = vsyncpa [#allocation3], 0
    %s11 = scalar_lea.sflag [#allocation3], 1
    %12 = vsyncpa %s11, 0
    %13 = vsyncpa [#allocation6], 0
    %s14 = scalar_lea.sflag [#allocation6], 1
    %15 = vsyncpa %s14, 0
    %16 = vsyncpa [#allocation9], 0
    %s17 = scalar_lea.sflag [#allocation9], 1
    %18 = vsyncpa %s17, 0
    %19 = vsyncpa [#allocation4], 0
    %s20 = scalar_lea.sflag [#allocation4], 1
    %21 = vsyncpa %s20, 0
    loop: start=0, step=1, limit=6
    $region2: #{tpu_custom_call.1} parent=1 // loop_pre_header
      _
    $region3: #{tpu_custom_call.1} parent=1 // loop_header
      %s23 = sphi 0, %s27
      %p24 = scmp.ge.s32.totalorder %s23, 6
      %s30 = sphi 0, %s42
      %s31 = sphi 0, %s38
      %s32 = sphi 0, %s30
      %s33 = sphi 0, %s31
      %s34 = sphi 0, %s32
      %s35 = sphi 0, %s33
      %s47 = sphi 0, %s49
      %s50 = sphi 0, %s47
      %s51 = sphi 0, %s50
      %s67 = sphi 0, %s51
      %s75 = sphi 0, %s77
      %s78 = sphi 0, %s75
      %s79 = sphi 0, %s78
      %s95 = sphi 0, %s79
      %s103 = sphi 0, %s105
      %s106 = sphi 0, %s103
      %s107 = sphi 0, %s106
      %s123 = sphi 0, %s107
      %s131 = sphi 0, %s133
      %s134 = sphi 0, %s131
      %s135 = sphi 0, %s134
      %s151 = sphi 0, %s135
      %s159 = sphi 0, %s161
      %s162 = sphi 0, %s159
      %s163 = sphi 0, %s162
      %s179 = sphi 0, %s163
      %s185 = sphi 0, %s187
      %s188 = sphi 0, %s185
      %s189 = sphi 0, %s188
      %s205 = sphi 0, %s189
    $region4: #{tpu_custom_call.1} parent=1 // loop_header_branch
      %26 = sbr.rel (%p24) target = $region8
    $region5: #{tpu_custom_call.1} parent=1 // loop_body
      %s28 = ssub.s32 %s23, 1
      %s29 = ssub.s32 %s23, 2
      %s36 = sadd.s32 1, %s31
      %p37 = scmp.ge.s32.totalorder %s36, 2
      %s38 = scalar_select %p37, 0, %s36
      %s39 = sadd.s32 1, %s30
      %s40 = scalar_select %p37, %s39, %s30
      %p41 = scmp.ge.s32.totalorder %s40, 2
      %s42 = scalar_select %p41, 0, %s40
      %s43 = ssub.s32 %s31, %s38
      %s44 = ssub.s32 %s30, %s42
      %s45 = sor.u32 %s43, %s44
      %p46 = scmp.eq.s32.totalorder %s45, 0
      %s48 = sadd.s32 %s47, 1
      %s49 = scalar_select %p46, %s47, %s48
      %p52 = pneg %p46
      %p53 = scmp.eq.s32.totalorder %s23, 3
      %p54 = por %p52, %p53
      %p55 = scmp.ne.s32.totalorder %s47, %s50
      %p56 = scmp.eq.s32.totalorder %s23, 0
      %p57 = por %p55, %p56
      %p58 = scmp.ne.s32.totalorder %s47, %s50
      %p59 = scmp.eq.s32.totalorder %s28, 3
      %p60 = por %p58, %p59
      %p61 = scmp.ne.s32.totalorder %s50, %s51
      %p62 = scmp.eq.s32.totalorder %s28, 0
      %p63 = por %p61, %p62
      %p64 = scmp.ne.s32.totalorder %s50, %s51
      %p65 = scmp.eq.s32.totalorder %s29, 3
      %p66 = por %p64, %p65
      %p68 = scmp.ne.s32.totalorder %s51, %s67
      %p69 = scmp.eq.s32.totalorder %s29, 0
      %p70 = por %p68, %p69
      %s71 = ssub.s32 %s31, %s38
      %s72 = ssub.s32 %s30, %s42
      %s73 = sor.u32 %s71, %s72
      %p74 = scmp.eq.s32.totalorder %s73, 0
      %s76 = sadd.s32 %s75, 1
      %s77 = scalar_select %p74, %s75, %s76
      %p80 = pneg %p74
      %p81 = scmp.eq.s32.totalorder %s23, 3
      %p82 = por %p80, %p81
      %p83 = scmp.ne.s32.totalorder %s75, %s78
      %p84 = scmp.eq.s32.totalorder %s23, 0
      %p85 = por %p83, %p84
      %p86 = scmp.ne.s32.totalorder %s75, %s78
      %p87 = scmp.eq.s32.totalorder %s28, 3
      %p88 = por %p86, %p87
      %p89 = scmp.ne.s32.totalorder %s78, %s79
      %p90 = scmp.eq.s32.totalorder %s28, 0
      %p91 = por %p89, %p90
      %p92 = scmp.ne.s32.totalorder %s78, %s79
      %p93 = scmp.eq.s32.totalorder %s29, 3
      %p94 = por %p92, %p93
      %p96 = scmp.ne.s32.totalorder %s79, %s95
      %p97 = scmp.eq.s32.totalorder %s29, 0
      %p98 = por %p96, %p97
      %s99 = ssub.s32 %s31, %s38
      %s100 = ssub.s32 %s30, %s42
      %s101 = sor.u32 %s99, %s100
      %p102 = scmp.eq.s32.totalorder %s101, 0
      %s104 = sadd.s32 %s103, 1
      %s105 = scalar_select %p102, %s103, %s104
      %p108 = pneg %p102
      %p109 = scmp.eq.s32.totalorder %s23, 3
      %p110 = por %p108, %p109
      %p111 = scmp.ne.s32.totalorder %s103, %s106
      %p112 = scmp.eq.s32.totalorder %s23, 0
      %p113 = por %p111, %p112
      %p114 = scmp.ne.s32.totalorder %s103, %s106
      %p115 = scmp.eq.s32.totalorder %s28, 3
      %p116 = por %p114, %p115
      %p117 = scmp.ne.s32.totalorder %s106, %s107
      %p118 = scmp.eq.s32.totalorder %s28, 0
      %p119 = por %p117, %p118
      %p120 = scmp.ne.s32.totalorder %s106, %s107
      %p121 = scmp.eq.s32.totalorder %s29, 3
      %p122 = por %p120, %p121
      %p124 = scmp.ne.s32.totalorder %s107, %s123
      %p125 = scmp.eq.s32.totalorder %s29, 0
      %p126 = por %p124, %p125
      %s127 = ssub.s32 %s31, %s38
      %s128 = ssub.s32 %s30, %s42
      %s129 = sor.u32 %s127, %s128
      %p130 = scmp.eq.s32.totalorder %s129, 0
      %s132 = sadd.s32 %s131, 1
      %s133 = scalar_select %p130, %s131, %s132
      %p136 = pneg %p130
      %p137 = scmp.eq.s32.totalorder %s23, 3
      %p138 = por %p136, %p137
      %p139 = scmp.ne.s32.totalorder %s131, %s134
      %p140 = scmp.eq.s32.totalorder %s23, 0
      %p141 = por %p139, %p140
      %p142 = scmp.ne.s32.totalorder %s131, %s134
      %p143 = scmp.eq.s32.totalorder %s28, 3
      %p144 = por %p142, %p143
      %p145 = scmp.ne.s32.totalorder %s134, %s135
      %p146 = scmp.eq.s32.totalorder %s28, 0
      %p147 = por %p145, %p146
      %p148 = scmp.ne.s32.totalorder %s134, %s135
      %p149 = scmp.eq.s32.totalorder %s29, 3
      %p150 = por %p148, %p149
      %p152 = scmp.ne.s32.totalorder %s135, %s151
      %p153 = scmp.eq.s32.totalorder %s29, 0
      %p154 = por %p152, %p153
      %s155 = ssub.s32 %s31, %s38
      %s156 = ssub.s32 %s30, %s42
      %s157 = sor.u32 %s155, %s156
      %p158 = scmp.eq.s32.totalorder %s157, 0
      %s160 = sadd.s32 %s159, 1
      %s161 = scalar_select %p158, %s159, %s160
      %p164 = pneg %p158
      %p165 = scmp.eq.s32.totalorder %s23, 3
      %p166 = por %p164, %p165
      %p167 = scmp.ne.s32.totalorder %s159, %s162
      %p168 = scmp.eq.s32.totalorder %s23, 0
      %p169 = por %p167, %p168
      %p170 = scmp.ne.s32.totalorder %s159, %s162
      %p171 = scmp.eq.s32.totalorder %s28, 3
      %p172 = por %p170, %p171
      %p173 = scmp.ne.s32.totalorder %s162, %s163
      %p174 = scmp.eq.s32.totalorder %s28, 0
      %p175 = por %p173, %p174
      %p176 = scmp.ne.s32.totalorder %s162, %s163
      %p177 = scmp.eq.s32.totalorder %s29, 3
      %p178 = por %p176, %p177
      %p180 = scmp.ne.s32.totalorder %s163, %s179
      %p181 = scmp.eq.s32.totalorder %s29, 0
      %p182 = por %p180, %p181
      %s183 = ssub.s32 %s30, %s42
      %p184 = scmp.eq.s32.totalorder %s183, 0
      %s186 = sadd.s32 %s185, 1
      %s187 = scalar_select %p184, %s185, %s186
      %p190 = pneg %p184
      %p191 = scmp.eq.s32.totalorder %s23, 3
      %p192 = por %p190, %p191
      %p193 = scmp.ne.s32.totalorder %s185, %s188
      %p194 = scmp.eq.s32.totalorder %s23, 0
      %p195 = por %p193, %p194
      %p196 = scmp.ne.s32.totalorder %s185, %s188
      %p197 = scmp.eq.s32.totalorder %s28, 3
      %p198 = por %p196, %p197
      %p199 = scmp.ne.s32.totalorder %s188, %s189
      %p200 = scmp.eq.s32.totalorder %s28, 0
      %p201 = por %p199, %p200
      %p202 = scmp.ne.s32.totalorder %s188, %s189
      %p203 = scmp.eq.s32.totalorder %s29, 3
      %p204 = por %p202, %p203
      %p206 = scmp.ne.s32.totalorder %s189, %s205
      %p207 = scmp.eq.s32.totalorder %s29, 0
      %p208 = por %p206, %p207
      %p209 = scmp.le.s32.totalorder 1, %s23
      %p210 = scmp.lt.s32.totalorder %s23, 5
      %p211 = pnand %p209, %p210
      %p212 = pneg %p211
      // Predicated region
      $region9: #{tpu_custom_call.1} parent=5 // pred_check
        _
      $region10: #{tpu_custom_call.1} parent=5 // pred_check_branch
        %214 = sbr.rel (%p211) target = $region12
      $region11: #{tpu_custom_call.1} parent=5 // pred_region
        %s215 = ssub.s32 %s23, 1
      $region12: #{tpu_custom_call.1} parent=5 // pred_fallthru
        _
      %p216 = scmp.lt.s32.totalorder %s23, 4
      // Predicated region
      $region13: #{tpu_custom_call.1} parent=5 // pred_check
        %p217 = pneg %p216
      $region14: #{tpu_custom_call.1} parent=5 // pred_check_branch
        %219 = sbr.rel (%p217) target = $region16
      $region15: #{tpu_custom_call.1} parent=5 // pred_region
        // Predicated region
        $region17: #{tpu_custom_call.1} parent=15 // pred_check
          %p220 = pneg %p57
        $region18: #{tpu_custom_call.1} parent=15 // pred_check_branch
          %222 = sbr.rel (%p220) target = $region20
        $region19: #{tpu_custom_call.1} parent=15 // pred_region
          %s223 = sand.u32 %s47, 1
          %s224 = scalar_lea.sflag [#allocation3], %s223
          %s225 = sand.u32 %s47, 1
          %s226 = smul.addr %s225, 4
          %s227 = scalar_lea.vmem [#allocation2], %s226
          %s229 = ssub.s32 64, 64
          %230 = vsyncadd %s224, %s229
          %s231 = smul.addr %s31, 2
          %s232 = sadd.s32 %s30, %s231
          %s233 = smul.addr %s232, 64
          %s234 = scalar_lea.hbm %s0, %s233
          %s236 = sshll.u32 %s227, 4
          %s237 = int_to_ptr.vmem [resolvable:$true] %s236
          %239 = dma.hbm_to_vmem [thread:$0]  %s234, 64, %s237, %s224
        $region20: #{tpu_custom_call.1} parent=15 // pred_fallthru
          _
        // Predicated region
        $region21: #{tpu_custom_call.1} parent=15 // pred_check
          %p240 = pneg %p85
        $region22: #{tpu_custom_call.1} parent=15 // pred_check_branch
          %242 = sbr.rel (%p240) target = $region24
        $region23: #{tpu_custom_call.1} parent=15 // pred_region
          %s243 = sand.u32 %s23, 1
          %s244 = scalar_lea.sflag [#allocation6], %s243
          %s245 = sand.u32 %s75, 1
          %s246 = smul.addr %s245, 4
          %s247 = scalar_lea.vmem [#allocation5], %s246
          %s249 = ssub.s32 64, 64
          %250 = vsyncadd %s244, %s249
          %s251 = smul.addr %s31, 2
          %s252 = sadd.s32 %s30, %s251
          %s253 = smul.addr %s252, 64
          %s254 = scalar_lea.hbm %s1, %s253
          %s256 = sshll.u32 %s247, 4
          %s257 = int_to_ptr.vmem [resolvable:$true] %s256
          %259 = dma.hbm_to_vmem [thread:$0]  %s254, 64, %s257, %s244
        $region24: #{tpu_custom_call.1} parent=15 // pred_fallthru
          _
        // Predicated region
        $region25: #{tpu_custom_call.1} parent=15 // pred_check
          %p260 = pneg %p113
        $region26: #{tpu_custom_call.1} parent=15 // pred_check_branch
          %262 = sbr.rel (%p260) target = $region28
        $region27: #{tpu_custom_call.1} parent=15 // pred_region
          %s263 = sand.u32 %s23, 1
          %s264 = scalar_lea.sflag [#allocation6], %s263
          %s265 = sand.u32 %s103, 1
          %s266 = smul.addr %s265, 4
          %s267 = scalar_lea.vmem [#allocation7], %s266
          %s269 = ssub.s32 64, 64
          %270 = vsyncadd %s264, %s269
          %s271 = smul.addr %s31, 2
          %s272 = sadd.s32 %s30, %s271
          %s273 = smul.addr %s272, 64
          %s274 = scalar_lea.hbm %s2, %s273
          %s276 = sshll.u32 %s267, 4
          %s277 = int_to_ptr.vmem [resolvable:$true] %s276
          %279 = dma.hbm_to_vmem [thread:$0]  %s274, 64, %s277, %s264
        $region28: #{tpu_custom_call.1} parent=15 // pred_fallthru
          _
        // Predicated region
        $region29: #{tpu_custom_call.1} parent=15 // pred_check
          %p280 = pneg %p141
        $region30: #{tpu_custom_call.1} parent=15 // pred_check_branch
          %282 = sbr.rel (%p280) target = $region32
        $region31: #{tpu_custom_call.1} parent=15 // pred_region
          %p283 = scmp.lt.s32.totalorder %s31, 1
          %s284 = scalar_select %p283, %s31, 1
          %p285 = scmp.lt.s32.totalorder %s30, 1
          %s286 = scalar_select %p285, %s30, 1
          %s287 = smul.addr %s284, 2
          %s288 = sadd.s32 %s286, %s287
          %s289 = scalar_lea.vmem %s3, %s288
        $region32: #{tpu_custom_call.1} parent=15 // pred_fallthru
          _
        // Predicated region
        $region33: #{tpu_custom_call.1} parent=15 // pred_check
          %p290 = pneg %p169
        $region34: #{tpu_custom_call.1} parent=15 // pred_check_branch
          %292 = sbr.rel (%p290) target = $region36
        $region35: #{tpu_custom_call.1} parent=15 // pred_region
          %s293 = sand.u32 %s159, 1
          %s294 = scalar_lea.sflag [#allocation9], %s293
          %s295 = sand.u32 %s159, 1
          %s296 = smul.addr %s295, 4
          %s297 = scalar_lea.vmem [#allocation8], %s296
          %s299 = ssub.s32 64, 64
          %300 = vsyncadd %s294, %s299
          %s301 = smul.addr %s31, 2
          %s302 = sadd.s32 %s30, %s301
          %s303 = smul.addr %s302, 64
          %s304 = scalar_lea.hbm %s4, %s303
          %s306 = sshll.u32 %s297, 4
          %s307 = int_to_ptr.vmem [resolvable:$true] %s306
          %309 = dma.hbm_to_vmem [thread:$0]  %s304, 64, %s307, %s294
        $region36: #{tpu_custom_call.1} parent=15 // pred_fallthru
          _
      $region16: #{tpu_custom_call.1} parent=5 // pred_fallthru
        _
      %p310 = scmp.le.s32.totalorder 1, %s23
      %p311 = scmp.lt.s32.totalorder %s23, 5
      %p312 = pnand %p310, %p311
      %p313 = pneg %p312
      // Predicated region
      $region37: #{tpu_custom_call.1} parent=5 // pred_check
        _
      $region38: #{tpu_custom_call.1} parent=5 // pred_check_branch
        %315 = sbr.rel (%p312) target = $region40
      $region39: #{tpu_custom_call.1} parent=5 // pred_region
        %s316 = ssub.s32 %s23, 1
        %s317 = sand.u32 %s50, 1
        %s318 = scalar_lea.sflag [#allocation3], %s317
        %s319 = sand.u32 %s50, 1
        %s320 = smul.addr %s319, 4
        %s321 = scalar_lea.vmem [#allocation2], %s320
        // Predicated region
        $region41: #{tpu_custom_call.1} parent=39 // pred_check
          %p322 = pneg %p63
        $region42: #{tpu_custom_call.1} parent=39 // pred_check_branch
          %324 = sbr.rel (%p322) target = $region44
        $region43: #{tpu_custom_call.1} parent=39 // pred_region
          %325 = dma.done %s318, 64
        $region44: #{tpu_custom_call.1} parent=39 // pred_fallthru
          _
        %s326 = sand.u32 %s28, 1
        %s327 = scalar_lea.sflag [#allocation6], %s326
        %s328 = sand.u32 %s78, 1
        %s329 = smul.addr %s328, 4
        %s330 = scalar_lea.vmem [#allocation5], %s329
        // Predicated region
        $region45: #{tpu_custom_call.1} parent=39 // pred_check
          %p331 = pneg %p91
        $region46: #{tpu_custom_call.1} parent=39 // pred_check_branch
          %333 = sbr.rel (%p331) target = $region48
        $region47: #{tpu_custom_call.1} parent=39 // pred_region
          %334 = dma.done %s327, 64
        $region48: #{tpu_custom_call.1} parent=39 // pred_fallthru
          _
        %s335 = sand.u32 %s28, 1
        %s336 = scalar_lea.sflag [#allocation6], %s335
        %s337 = sand.u32 %s106, 1
        %s338 = smul.addr %s337, 4
        %s339 = scalar_lea.vmem [#allocation7], %s338
        // Predicated region
        $region49: #{tpu_custom_call.1} parent=39 // pred_check
          %p340 = pneg %p119
        $region50: #{tpu_custom_call.1} parent=39 // pred_check_branch
          %342 = sbr.rel (%p340) target = $region52
        $region51: #{tpu_custom_call.1} parent=39 // pred_region
          %343 = dma.done %s336, 64
        $region52: #{tpu_custom_call.1} parent=39 // pred_fallthru
          _
        %s344 = sand.u32 %s162, 1
        %s345 = scalar_lea.sflag [#allocation9], %s344
        %s346 = sand.u32 %s162, 1
        %s347 = smul.addr %s346, 4
        %s348 = scalar_lea.vmem [#allocation8], %s347
        // Predicated region
        $region53: #{tpu_custom_call.1} parent=39 // pred_check
          %p349 = pneg %p175
        $region54: #{tpu_custom_call.1} parent=39 // pred_check_branch
          %351 = sbr.rel (%p349) target = $region56
        $region55: #{tpu_custom_call.1} parent=39 // pred_region
          %352 = dma.done %s345, 64
        $region56: #{tpu_custom_call.1} parent=39 // pred_fallthru
          _
        %s353 = sand.u32 %s50, 1
        %s354 = scalar_lea.sflag [#allocation3], %s353
        %s355 = sand.u32 %s50, 1
        %s356 = smul.addr %s355, 4
        %s357 = scalar_lea.vmem [#allocation2], %s356
        %p358 = pneg %p63
        %p359 = pneg %p60
        %s360 = sand.u32 %s28, 1
        %s361 = scalar_lea.sflag [#allocation6], %s360
        %s362 = sand.u32 %s78, 1
        %s363 = smul.addr %s362, 4
        %s364 = scalar_lea.vmem [#allocation5], %s363
        %p365 = pneg %p91
        %p366 = pneg %p88
        %s367 = sand.u32 %s28, 1
        %s368 = scalar_lea.sflag [#allocation6], %s367
        %s369 = sand.u32 %s106, 1
        %s370 = smul.addr %s369, 4
        %s371 = scalar_lea.vmem [#allocation7], %s370
        %p372 = pneg %p119
        %p373 = pneg %p116
        %p374 = scmp.lt.s32.totalorder %s33, 1
        %s375 = scalar_select %p374, %s33, 1
        %p376 = scmp.lt.s32.totalorder %s32, 1
        %s377 = scalar_select %p376, %s32, 1
        %s378 = smul.addr %s375, 2
        %s379 = sadd.s32 %s377, %s378
        %s380 = scalar_lea.vmem %s3, %s379
        %p381 = pneg %p147
        %p382 = pneg %p144
        %s383 = sand.u32 %s162, 1
        %s384 = scalar_lea.sflag [#allocation9], %s383
        %s385 = sand.u32 %s162, 1
        %s386 = smul.addr %s385, 4
        %s387 = scalar_lea.vmem [#allocation8], %s386
        %p388 = pneg %p175
        %p389 = pneg %p172
        %p390 = pneg %p201
        %p391 = pneg %p198
        %s392 = sand.u32 %s188, 1
        %s393 = scalar_lea.sflag [#allocation4], %s392
        %s394 = sand.u32 %s188, 1
        %s395 = smul.addr %s394, 8
        %s396 = scalar_lea.vmem [#allocation10], %s395
        %p397 = scmp.lt.s32.totalorder %s33, 1
        %s398 = scalar_select %p397, %s33, 1
        %p399 = scmp.lt.s32.totalorder %s32, 1
        %s400 = scalar_select %p399, %s32, 1
        %s401 = smul.addr %s398, 2
        %s402 = sadd.s32 %s400, %s401
        %s403 = scalar_lea.vmem %s3, %s402
        %p404 = scmp.eq.s32.totalorder %s33, 0
        // Predicated region
        $region57: #{tpu_custom_call.1} parent=39 // pred_check
          %p405 = pneg %p404
        $region58: #{tpu_custom_call.1} parent=39 // pred_check_branch
          %407 = sbr.rel (%p405) target = $region60
        $region59: #{tpu_custom_call.1} parent=39 // pred_region
          %408 = vst [vmem:[%s396] sm:$0xff] 0.0
        $region60: #{tpu_custom_call.1} parent=39 // pred_fallthru
          _
        %v409 = vld [vmem:[%s321] sm:$0xf]
        %v410 = vld [vmem:[%s330] sm:$0xf]
        %v411 = vld [vmem:[%s339] sm:$0xf]
        %v412 = vld [vmem:[%s403] sm:$0x1]
        %v413 = vld [vmem:[%s348] sm:$0xf]
        %v414 = vlaneseq
        %v415 = vshrl.u32 %v414, 7
        %vm416 = vcmp.lt.s32.totalorder %v415, 2
        %v417 = vxor.u32 %v409, 2147483648
        %v418 = vmul.f32 %v417, 1.442695
        %v419 = vpow.pop %v418
        %v420 = vadd.f32 %v419, 1.0
        %v421 = vrcp.pop %v420
        %v422 = vmul.f32 1.0, %v421
        %v423 = vsel %vm416, 1, 0
        %vm424 = vcmp.eq.s32.totalorder %v423, 1
        %v425 = vsel %vm424, %v422, %v409
        %v426 = vsub.f32 %v425, %v411
        %v427 = vand.u32 2147483647, %v426
        %vm428 = vcmp.lt.f32.partialorder %v427, 1.0
        %v429 = vmul.f32 %v426, 0.5
        %v430 = vmul.f32 %v429, %v426
        %v431 = vsub.f32 %v427, 0.5
        %v432 = vsel %vm428, %v430, %v431
        %v434 = vlaneseq
        %v435 = vshrl.u32 %v434, 7
        %v436 = vsub.s32 0, %v435
        %v437 = vrot.slane %v412, %v436
        %v439 = vmul.f32 %v437, %v432
        %v440 = vand.u32 2147483647, %v410
        %v441 = vsub.f32 0.0, %v440
        %v442 = vmul.f32 %v441, 1.442695
        %v443 = vpow.pop %v442
        %v444 = vadd.f32 %v443, 1.0
        %v445 = vrcp.pop %v444
        %vm446 = vcmp.ge.f32.partialorder %v410, 0.0
        %v447 = vmul.f32 %v443, %v445
        %v448 = vsel %vm446, %v445, %v447
        %v449 = vmin.f32 %v410, 0.0
        %v450 = vlog2.pop %v444
        %v451 = vmul.f32 %v450, 0.6931472
        %v452 = vsub.f32 %v449, %v451
        %v453 = vsub.f32 %v452, %v410
        %vm454 = vcmp.ge.f32.partialorder %v413, 1.0
        %v455 = vsel %vm454, 1, 0
        %v456 = vcvt.s32.f32 %v455
        %v457 = vsub.f32 1.0, %v456
        %v458 = vsub.f32 1.0, %v413
        %v459 = vmul.f32 %v458, %v458
        %v460 = vmul.f32 %v459, %v459
        %v461 = vsub.f32 1.0, %v448
        %v462 = vmul.f32 %v461, %v461
        %v463 = vmul.f32 %v452, %v462
        %v464 = vmul.f32 %v463, %v456
        %v465 = vmul.f32 %v448, %v448
        %v466 = vmul.f32 %v453, %v465
        %v467 = vmul.f32 %v466, %v460
        %v468 = vmul.f32 %v467, %v457
        %v469 = vadd.f32 %v464, %v468
        %v470 = vsub.f32 0.0, %v469
        %vm471 = vcmask 1043456
        %v472 = vsel %vm471, %v470, 0.0
        %v473 = vrot.slane %v472, 4
        %v474 = vadd.f32 %v472, %v473
        %v475 = vrot.slane %v474, 2
        %v476 = vadd.f32 %v474, %v475
        %v477 = vrot.slane %v476, 1
        %v478 = vadd.f32 %v476, %v477
        %v479 = vsel %vm471, %v439, %v478
        %vm480 = vcmask 1044480
        %v481 = vsel %vm480, %v479, 0.0
        %v482 = vld [vmem:[%s396] sm:$0xff]
        %v483 = vadd.f32 %v482, %v481
        %484 = vst [vmem:[%s396] sm:$0xff] %v483
        %s485 = sand.u32 %s188, 1
        %s486 = scalar_lea.sflag [#allocation4], %s485
        %s487 = sand.u32 %s188, 1
        %s488 = smul.addr %s487, 8
        %s489 = scalar_lea.vmem [#allocation10], %s488
        // Predicated region
        $region61: #{tpu_custom_call.1} parent=39 // pred_check
          %p490 = pneg %p198
        $region62: #{tpu_custom_call.1} parent=39 // pred_check_branch
          %492 = sbr.rel (%p490) target = $region64
        $region63: #{tpu_custom_call.1} parent=39 // pred_region
          %s494 = ssub.s32 128, 128
          %495 = vsyncadd %s486, %s494
          %s496 = smul.addr %s32, 128
          %s497 = scalar_lea.hbm %s5, %s496
          %s499 = sshll.u32 %s489, 4
          %s500 = int_to_ptr.vmem [resolvable:$true] %s499
          %502 = dma.vmem_to_hbm [thread:$0]  %s500, 128, %s497, %s486
        $region64: #{tpu_custom_call.1} parent=39 // pred_fallthru
          _
      $region40: #{tpu_custom_call.1} parent=5 // pred_fallthru
        _
      %p503 = scmp.le.s32.totalorder 2, %s23
      // Predicated region
      $region65: #{tpu_custom_call.1} parent=5 // pred_check
        %p504 = pneg %p503
      $region66: #{tpu_custom_call.1} parent=5 // pred_check_branch
        %506 = sbr.rel (%p504) target = $region68
      $region67: #{tpu_custom_call.1} parent=5 // pred_region
        %s507 = ssub.s32 %s23, 2
        // Predicated region
        $region69: #{tpu_custom_call.1} parent=67 // pred_check
          %p508 = pneg %p204
        $region70: #{tpu_custom_call.1} parent=67 // pred_check_branch
          %510 = sbr.rel (%p508) target = $region72
        $region71: #{tpu_custom_call.1} parent=67 // pred_region
          %s511 = sand.u32 %s189, 1
          %s512 = scalar_lea.sflag [#allocation4], %s511
          %s513 = sand.u32 %s189, 1
          %s514 = smul.addr %s513, 8
          %s515 = scalar_lea.vmem [#allocation10], %s514
          %516 = dma.done %s512, 128
        $region72: #{tpu_custom_call.1} parent=67 // pred_fallthru
          _
      $region68: #{tpu_custom_call.1} parent=5 // pred_fallthru
        _
    $region6: #{tpu_custom_call.1} parent=1 // loop_footer
      %s27 = sadd.s32 1, %s23
    $region7: #{tpu_custom_call.1} parent=1 // loop_footer_branch
      %22 = sbr.rel target = $region3
    $region8: #{tpu_custom_call.1} parent=1 // loop_exit
      _
    %517 = vsyncpa [#allocation3], 1
    %s518 = scalar_lea.sflag [#allocation3], 1
    %519 = vsyncpa %s518, 1
    %520 = vsyncpa [#allocation6], 1
    %s521 = scalar_lea.sflag [#allocation6], 1
    %522 = vsyncpa %s521, 1
    %523 = vsyncpa [#allocation9], 1
    %s524 = scalar_lea.sflag [#allocation9], 1
    %525 = vsyncpa %s524, 1
    %526 = vsyncpa [#allocation4], 1
    %s527 = scalar_lea.sflag [#allocation4], 1
    %528 = vsyncpa %s527, 1

</llo_original>
